<compile_context>
chip_gen: v6e
topology: v6e:2x2x1
jax: 0.10.0
libtpu: 0.0.40
codegen_flags: <defaults>
</compile_context>

<pallas_src>
import jax
import jax.numpy as jnp
from jax import lax
from jax.experimental import pallas as pl
from jax.experimental.pallas import tpu as pltpu


def _idp_sf_kernel(s_ref, a_ref, w1s_ref, w1a_ref, b1_ref,
                   w2_ref, b2_ref, weff_ref, beff_ref, q_ref):
    # h1 = relu(state @ W1_s + action @ W1_a + b1)            (tb, H)
    h = (jnp.dot(s_ref[...], w1s_ref[...], preferred_element_type=jnp.float32)
         + jnp.dot(a_ref[...], w1a_ref[...], preferred_element_type=jnp.float32)
         + b1_ref[...])
    h = jnp.maximum(h, 0.0)
    # h2 = relu(h1 @ W2 + b2)                                 (tb, H)
    h = jnp.dot(h, w2_ref[...], preferred_element_type=jnp.float32) + b2_ref[...]
    h = jnp.maximum(h, 0.0)
    # Q^T = w_eff(1,H) . h2^T(H,tb) + b_eff                   (1, tb)  lane-dense
    q_row = lax.dot_general(
        weff_ref[...], h,
        dimension_numbers=(((1,), (1,)), ((), ())),
        preferred_element_type=jnp.float32) + beff_ref[...]
    q_ref[0] = q_row.astype(q_ref.dtype)


def idp_sf_forward(state, action, params, *, max_tile=256):
    """Pallas implementation of IdpSF.forward (returns Q of shape (B, 1))."""
    B, S = state.shape
    _, A = action.shape
    w1, b1 = params["psi_w1"], params["psi_b1"]          # (S+A, H), (1, H)
    w2, b2 = params["psi_w2"], params["psi_b2"]          # (H, H),   (1, H)
    w3, b3 = params["psi_w3"], params["psi_b3"]          # (H, F),   (1, F)
    ww, bw = params["w_w"], params["w_b"]                # (F, 1),   (1, 1)
    H = w1.shape[1]

    # One-time (wrapper-side) algebraic folds — psi is never an output.
    w_eff = (w3 @ ww).reshape(1, H)                      # (1, H)
    b_eff = (b3 @ ww + bw).reshape(1, 1)                 # (1, 1)
    w1s, w1a = w1[:S, :], w1[S:, :]                      # concat fusion

    # Batch tiling: pad to a sublane multiple; single block if it fits, else 256-row tiles.
    b_pad = B + ((-B) % 8)
    if b_pad <= max_tile:
        tb = b_pad
    else:
        tb = max_tile
        b_pad = ((b_pad + tb - 1) // tb) * tb
    if b_pad != B:
        state = jnp.pad(state, ((0, b_pad - B), (0, 0)))
        action = jnp.pad(action, ((0, b_pad - B), (0, 0)))
    grid = b_pad // tb

    def const(shape):
        # Weights/biases: same full block at every grid step (stay VMEM-resident).
        return pl.BlockSpec(shape, lambda i, _s=shape: tuple(0 for _ in _s))

    out = pl.pallas_call(
        _idp_sf_kernel,
        out_shape=jax.ShapeDtypeStruct((grid, 1, tb), jnp.float32),
        grid_spec=pl.GridSpec(
            grid=(grid,),
            in_specs=[
                pl.BlockSpec((tb, S), lambda i: (i, 0)),   # state tile over batch
                pl.BlockSpec((tb, A), lambda i: (i, 0)),   # action tile over batch
                const((S, H)), const((A, H)), const((1, H)),
                const((H, H)), const((1, H)),
                const((1, H)), const((1, 1)),
            ],
            out_specs=pl.BlockSpec((1, 1, tb), lambda i: (i, 0, 0)),
        ),
        compiler_params=pltpu.CompilerParams(
            dimension_semantics=("parallel",)),
    )(state, action, w1s, w1a, b1, w2, b2, w_eff, b_eff)

    # (grid, 1, tb) -> (B, 1); drop batch padding.
    return out.reshape(grid * tb, 1)[:B]


def make_params(key, state_dim, action_dim, feat_dim, hidden_dim):
    """Deterministic synthetic init (nn.Linear shapes, stored as (in, out))."""
    d_in = state_dim + action_dim

    def linear(key, fan_in, fan_out):
        kw, kb = jax.random.split(key)
        bound = 1.0 / jnp.sqrt(fan_in)
        w = jax.random.uniform(kw, (fan_in, fan_out), jnp.float32, -bound, bound)
        b = jax.random.uniform(kb, (1, fan_out), jnp.float32, -bound, bound)
        return w, b

    keys = jax.random.split(key, 4)
    w1, b1 = linear(keys[0], d_in, hidden_dim)        # psi_l1
    w2, b2 = linear(keys[1], hidden_dim, hidden_dim)  # psi_l2
    w3, b3 = linear(keys[2], hidden_dim, feat_dim)    # psi_l3
    ww, bw = linear(keys[3], feat_dim, 1)             # weight head
    # NOTE: weight_l*/phi_l* layers are unused by forward(); only psi branch + head.
    return dict(psi_w1=w1, psi_b1=b1, psi_w2=w2, psi_b2=b2,
                psi_w3=w3, psi_b3=b3, w_w=ww, w_b=bw)


def reference_forward(state, action, p):
    x = jnp.concatenate([state, action], axis=1)
    h = jax.nn.relu(x @ p["psi_w1"] + p["psi_b1"])
    h = jax.nn.relu(h @ p["psi_w2"] + p["psi_b2"])
    psi = h @ p["psi_w3"] + p["psi_b3"]
    return psi @ p["w_w"] + p["w_b"]


if __name__ == "__main__":
    state_dim, action_dim, feat_dim, hidden_dim = 16, 8, 32, 32
    batch = 8

    key = jax.random.PRNGKey(0)
    k_params, k_state, k_action = jax.random.split(key, 3)
    params = make_params(k_params, state_dim, action_dim, feat_dim, hidden_dim)
    state = jax.random.normal(k_state, (batch, state_dim), jnp.float32)
    action = jax.random.normal(k_action, (batch, action_dim), jnp.float32)

    q = idp_sf_forward(state, action, params)
    q = jax.block_until_ready(q)

    q_ref = reference_forward(state, action, params)
    assert q.shape == (batch, 1)
    # Head fold (W3 @ Ww) reassociates one f32 reduction; tolerance covers it.
    assert jnp.allclose(q, q_ref, atol=1e-4, rtol=1e-4), jnp.max(jnp.abs(q - q_ref))
    print("KERNEL_OK")
</pallas_src>

<mosaic_0001>
module attributes {stable_mosaic.version = 11 : i64} {
  func.func @_idp_sf_kernel(%arg0: i32, %arg1: memref<8x16xf32, #tpu.memory_space<vmem>>, %arg2: memref<8x8xf32, #tpu.memory_space<vmem>>, %arg3: memref<16x32xf32, #tpu.memory_space<vmem>>, %arg4: memref<8x32xf32, #tpu.memory_space<vmem>>, %arg5: memref<1x32xf32, #tpu.memory_space<vmem>>, %arg6: memref<32x32xf32, #tpu.memory_space<vmem>>, %arg7: memref<1x32xf32, #tpu.memory_space<vmem>>, %arg8: memref<1x32xf32, #tpu.memory_space<vmem>>, %arg9: memref<1x1xf32, #tpu.memory_space<vmem>>, %arg10: memref<1x1x8xf32, #tpu.memory_space<vmem>>) attributes {dimension_semantics = [#tpu.dimension_semantics<parallel>], iteration_bounds = array<i64: 1>, scalar_prefetch = 0 : i64, scratch_operands = 0 : i64, tpu.core_type = #tpu.core_type<tc>, window_params = [{transform_indices = @transform_0, window_bounds = array<i64: 8, 16>}, {transform_indices = @transform_1, window_bounds = array<i64: 8, 8>}, {pipeline_mode = #tpu.pipeline_mode<synchronous>, transform_indices = @transform_2, window_bounds = array<i64: 16, 32>}, {pipeline_mode = #tpu.pipeline_mode<synchronous>, transform_indices = @transform_3, window_bounds = array<i64: 8, 32>}, {pipeline_mode = #tpu.pipeline_mode<synchronous>, transform_indices = @transform_4, window_bounds = array<i64: 1, 32>}, {pipeline_mode = #tpu.pipeline_mode<synchronous>, transform_indices = @transform_5, window_bounds = array<i64: 32, 32>}, {pipeline_mode = #tpu.pipeline_mode<synchronous>, transform_indices = @transform_6, window_bounds = array<i64: 1, 32>}, {pipeline_mode = #tpu.pipeline_mode<synchronous>, transform_indices = @transform_7, window_bounds = array<i64: 1, 32>}, {pipeline_mode = #tpu.pipeline_mode<synchronous>, transform_indices = @transform_8, window_bounds = array<i64: 1, 1>}, {transform_indices = @transform_9, window_bounds = array<i64: 1, 1, 8>}]} {
    %c0 = arith.constant 0 : index
    %c0_0 = arith.constant 0 : index
    %0 = vector.load %arg1[%c0, %c0_0] : memref<8x16xf32, #tpu.memory_space<vmem>>, vector<8x16xf32>
    %c0_1 = arith.constant 0 : index
    %c0_2 = arith.constant 0 : index
    %1 = vector.load %arg3[%c0_1, %c0_2] : memref<16x32xf32, #tpu.memory_space<vmem>>, vector<16x32xf32>
    %cst = arith.constant dense<0.000000e+00> : vector<8x32xf32>
    %2 = tpu.matmul %0, %1, %cst {dimension_numbers = #tpu.dot_dimension_numbers<[1], [0], [0], [1], [0, 0, 1, 1], [], []>} : vector<8x16xf32>, vector<16x32xf32>, vector<8x32xf32> -> vector<8x32xf32>
    %c0_3 = arith.constant 0 : index
    %c0_4 = arith.constant 0 : index
    %3 = vector.load %arg2[%c0_3, %c0_4] : memref<8x8xf32, #tpu.memory_space<vmem>>, vector<8x8xf32>
    %c0_5 = arith.constant 0 : index
    %c0_6 = arith.constant 0 : index
    %4 = vector.load %arg4[%c0_5, %c0_6] : memref<8x32xf32, #tpu.memory_space<vmem>>, vector<8x32xf32>
    %cst_7 = arith.constant dense<0.000000e+00> : vector<8x32xf32>
    %5 = tpu.matmul %3, %4, %cst_7 {dimension_numbers = #tpu.dot_dimension_numbers<[1], [0], [0], [1], [0, 0, 1, 1], [], []>} : vector<8x8xf32>, vector<8x32xf32>, vector<8x32xf32> -> vector<8x32xf32>
    %6 = arith.addf %2, %5 : vector<8x32xf32>
    %c0_8 = arith.constant 0 : index
    %c0_9 = arith.constant 0 : index
    %7 = vector.load %arg5[%c0_8, %c0_9] : memref<1x32xf32, #tpu.memory_space<vmem>>, vector<1x32xf32>
    %8 = vector.broadcast %7 : vector<1x32xf32> to vector<8x32xf32>
    %9 = arith.addf %6, %8 : vector<8x32xf32>
    %cst_10 = arith.constant 0.000000e+00 : f32
    %10 = vector.broadcast %cst_10 : f32 to vector<8x32xf32>
    %11 = arith.maximumf %9, %10 : vector<8x32xf32>
    %c0_11 = arith.constant 0 : index
    %c0_12 = arith.constant 0 : index
    %12 = vector.load %arg6[%c0_11, %c0_12] : memref<32x32xf32, #tpu.memory_space<vmem>>, vector<32x32xf32>
    %cst_13 = arith.constant dense<0.000000e+00> : vector<8x32xf32>
    %13 = tpu.matmul %11, %12, %cst_13 {dimension_numbers = #tpu.dot_dimension_numbers<[1], [0], [0], [1], [0, 0, 1, 1], [], []>} : vector<8x32xf32>, vector<32x32xf32>, vector<8x32xf32> -> vector<8x32xf32>
    %c0_14 = arith.constant 0 : index
    %c0_15 = arith.constant 0 : index
    %14 = vector.load %arg7[%c0_14, %c0_15] : memref<1x32xf32, #tpu.memory_space<vmem>>, vector<1x32xf32>
    %15 = vector.broadcast %14 : vector<1x32xf32> to vector<8x32xf32>
    %16 = arith.addf %13, %15 : vector<8x32xf32>
    %cst_16 = arith.constant 0.000000e+00 : f32
    %17 = vector.broadcast %cst_16 : f32 to vector<8x32xf32>
    %18 = arith.maximumf %16, %17 : vector<8x32xf32>
    %c0_17 = arith.constant 0 : index
    %c0_18 = arith.constant 0 : index
    %19 = vector.load %arg8[%c0_17, %c0_18] : memref<1x32xf32, #tpu.memory_space<vmem>>, vector<1x32xf32>
    %cst_19 = arith.constant dense<0.000000e+00> : vector<1x8xf32>
    %20 = tpu.matmul %19, %18, %cst_19 {dimension_numbers = #tpu.dot_dimension_numbers<[1], [1], [0], [0], [0, 0, 1, 0], [], []>} : vector<1x32xf32>, vector<8x32xf32>, vector<1x8xf32> -> vector<1x8xf32>
    %c0_20 = arith.constant 0 : index
    %c0_21 = arith.constant 0 : index
    %21 = vector.load %arg9[%c0_20, %c0_21] : memref<1x1xf32, #tpu.memory_space<vmem>>, vector<1x1xf32>
    %22 = vector.broadcast %21 : vector<1x1xf32> to vector<1x8xf32>
    %23 = arith.addf %20, %22 : vector<1x8xf32>
    %c0_22 = arith.constant 0 : index
    %c0_23 = arith.constant 0 : index
    %c0_24 = arith.constant 0 : index
    %24 = vector.load %arg10[%c0_22, %c0_23, %c0_24] : memref<1x1x8xf32, #tpu.memory_space<vmem>>, vector<1x1x8xf32>
    %25 = vector.shape_cast %24 : vector<1x1x8xf32> to vector<1x8xf32>
    %26 = vector.shape_cast %23 : vector<1x8xf32> to vector<1x1x8xf32>
    tpu.vector_store %arg10[%c0_22, %c0_23, %c0_24], %26 {strides = array<i32>} : memref<1x1x8xf32, #tpu.memory_space<vmem>>, vector<1x1x8xf32>,
    return
  }
  func.func @transform_0(%arg0: i32) -> (i32, i32) {
    %c0_i32 = arith.constant 0 : i32
    %c0_i32_0 = arith.constant 0 : i32
    return %arg0, %c0_i32 : i32, i32
  }
  func.func @transform_1(%arg0: i32) -> (i32, i32) {
    %c0_i32 = arith.constant 0 : i32
    %c0_i32_0 = arith.constant 0 : i32
    return %arg0, %c0_i32 : i32, i32
  }
  func.func @transform_2(%arg0: i32) -> (i32, i32) {
    %c0_i32 = arith.constant 0 : i32
    %c0_i32_0 = arith.constant 0 : i32
    %c0_i32_1 = arith.constant 0 : i32
    return %c0_i32, %c0_i32_0 : i32, i32
  }
  func.func @transform_3(%arg0: i32) -> (i32, i32) {
    %c0_i32 = arith.constant 0 : i32
    %c0_i32_0 = arith.constant 0 : i32
    %c0_i32_1 = arith.constant 0 : i32
    return %c0_i32, %c0_i32_0 : i32, i32
  }
  func.func @transform_4(%arg0: i32) -> (i32, i32) {
    %c0_i32 = arith.constant 0 : i32
    %c0_i32_0 = arith.constant 0 : i32
    %c0_i32_1 = arith.constant 0 : i32
    return %c0_i32, %c0_i32_0 : i32, i32
  }
  func.func @transform_5(%arg0: i32) -> (i32, i32) {
    %c0_i32 = arith.constant 0 : i32
    %c0_i32_0 = arith.constant 0 : i32
    %c0_i32_1 = arith.constant 0 : i32
    return %c0_i32, %c0_i32_0 : i32, i32
  }
  func.func @transform_6(%arg0: i32) -> (i32, i32) {
    %c0_i32 = arith.constant 0 : i32
    %c0_i32_0 = arith.constant 0 : i32
    %c0_i32_1 = arith.constant 0 : i32
    return %c0_i32, %c0_i32_0 : i32, i32
  }
  func.func @transform_7(%arg0: i32) -> (i32, i32) {
    %c0_i32 = arith.constant 0 : i32
    %c0_i32_0 = arith.constant 0 : i32
    %c0_i32_1 = arith.constant 0 : i32
    return %c0_i32, %c0_i32_0 : i32, i32
  }
  func.func @transform_8(%arg0: i32) -> (i32, i32) {
    %c0_i32 = arith.constant 0 : i32
    %c0_i32_0 = arith.constant 0 : i32
    %c0_i32_1 = arith.constant 0 : i32
    return %c0_i32, %c0_i32_0 : i32, i32
  }
  func.func @transform_9(%arg0: i32) -> (i32, i32, i32) {
    %c0_i32 = arith.constant 0 : i32
    %c0_i32_0 = arith.constant 0 : i32
    %c0_i32_1 = arith.constant 0 : i32
    return %arg0, %c0_i32, %c0_i32_0 : i32, i32, i32
  }
}

</mosaic_0001>

<llo_original>
// kernel: tpu_custom_call.1
$region0: #{tpu_custom_call.1}
  #allocation0 [shape = 'u32[]', space=smem, size = 0x4, offset = 0x4, fixed_abs, tag = 'smem constant byte address 0x4 - core index']
  #allocation1 [shape = 'u32[144,128]{1,0:T(1,128)}', space=vmem, size = 0x12000, scoped, tag = 'internal scratch']
  #allocation2 [shape = 'f32[1,1]{1,0:T(1,128)S(1)}', space=vmem, size = 0x200, scoped, tag = 'scoped memory for tpu_custom_call.1']
  %s0 = inlined_call_operand.hbm [shape: f32[8,16], index: 0, kind: input, shape index: {}]
  %s1 = inlined_call_operand.hbm [shape: f32[8,8], index: 1, kind: input, shape index: {}]
  %s2 = inlined_call_operand.hbm [shape: f32[16,32], index: 2, kind: input, shape index: {}]
  %s3 = inlined_call_operand.hbm [shape: f32[8,32], index: 3, kind: input, shape index: {}]
  %s4 = inlined_call_operand.vmem [shape: f32[1,32], index: 4, kind: input, shape index: {}]
  %s5 = inlined_call_operand.hbm [shape: f32[32,32], index: 5, kind: input, shape index: {}]
  %s6 = inlined_call_operand.vmem [shape: f32[1,32], index: 6, kind: input, shape index: {}]
  %s7 = inlined_call_operand.vmem [shape: f32[1,32], index: 7, kind: input, shape index: {}]
  %s8 = inlined_call_operand.<no memory space> [shape: f32[1,1], index: 8, kind: input, shape index: {}]
  %s9 = inlined_call_operand.hbm [shape: f32[1,1,8], index: 9, kind: output, shape index: {}]
  %s10 = sld [smem:[#allocation0]]
  $region66: #{tpu_custom_call.1} parent=0
    _
  %s12 = ssub.s32 1, %s10
  %s13 = scalar_select 0, %s12, %s10
  %v14 = vstv %s8
  %15 = vst [vmem:[#allocation2] sm:$0x1] %v14
  $region1: #{tpu_custom_call.1} parent=0
    #allocation3 [shape = 'u8[4096]{0}', space=vmem, size = 0x1000, scoped, tag = 'input window, operand 0, single buffered']
    #allocation4 [shape = 's32[1]{0}', space=sflag, size = 0x4, scoped, tag = 'scoped memory for tpu_custom_call.1']
    #allocation5 [shape = 's32[1]{0}', space=sflag, size = 0x4, scoped, tag = 'scoped memory for tpu_custom_call.1']
    #allocation6 [shape = 'u8[4096]{0}', space=vmem, size = 0x1000, scoped, tag = 'input window, operand 1, single buffered']
    #allocation7 [shape = 's32[1]{0}', space=sflag, size = 0x4, scoped, tag = 'scoped memory for tpu_custom_call.1']
    #allocation8 [shape = 'u8[8192]{0}', space=vmem, size = 0x2000, scoped, tag = 'input window, operand 2, single buffered']
    #allocation9 [shape = 'u8[4096]{0}', space=vmem, size = 0x1000, scoped, tag = 'input window, operand 3, single buffered']
    #allocation10 [shape = 's32[1]{0}', space=sflag, size = 0x4, scoped, tag = 'scoped memory for tpu_custom_call.1']
    #allocation11 [shape = 'u8[16384]{0}', space=vmem, size = 0x4000, scoped, tag = 'input window, operand 5, single buffered']
    #allocation12 [shape = 'u8[512]{0}', space=vmem, size = 0x400, scoped, tag = 'output window, operand 0, single buffered']
    %16 = vsyncpa [#allocation4], 0
    %17 = vsyncpa [#allocation7], 0
    %18 = vsyncpa [#allocation10], 0
    %19 = vsyncpa [#allocation5], 0
    // Predicated region
    $region2: #{tpu_custom_call.1} parent=1 // pred_check
      _
    $region3: #{tpu_custom_call.1} parent=1 // pred_check_branch
      %21 = sbr.rel (0) target = $region5
    $region4: #{tpu_custom_call.1} parent=1 // pred_region
      %s23 = ssub.s32 128, 128
      %24 = vsyncadd [#allocation4], %s23
      %s26 = sshll.u32 [#allocation3], 4
      %s27 = int_to_ptr.vmem [resolvable:$true] %s26
      %29 = dma.hbm_to_vmem [thread:$0]  %s0, 128, %s27, [#allocation4]
    $region5: #{tpu_custom_call.1} parent=1 // pred_fallthru
      _
    // Predicated region
    $region6: #{tpu_custom_call.1} parent=1 // pred_check
      _
    $region7: #{tpu_custom_call.1} parent=1 // pred_check_branch
      %31 = sbr.rel (0) target = $region9
    $region8: #{tpu_custom_call.1} parent=1 // pred_region
      %s33 = ssub.s32 128, 128
      %34 = vsyncadd [#allocation7], %s33
      %s36 = sshll.u32 [#allocation6], 4
      %s37 = int_to_ptr.vmem [resolvable:$true] %s36
      %39 = dma.hbm_to_vmem [thread:$0]  %s1, 128, %s37, [#allocation7]
    $region9: #{tpu_custom_call.1} parent=1 // pred_fallthru
      _
    // Predicated region
    $region10: #{tpu_custom_call.1} parent=1 // pred_check
      _
    $region11: #{tpu_custom_call.1} parent=1 // pred_check_branch
      %41 = sbr.rel (0) target = $region13
    $region12: #{tpu_custom_call.1} parent=1 // pred_region
      %s43 = ssub.s32 256, 256
      %44 = vsyncadd [#allocation7], %s43
      %s45 = sshll.u32 [#allocation8], 4
      %s46 = int_to_ptr.vmem [resolvable:$true] %s45
      %51 = dma.hbm_to_vmem [thread:$0]  %s2, 256, %s46, [#allocation7], 128, 128, 8
    $region13: #{tpu_custom_call.1} parent=1 // pred_fallthru
      _
    // Predicated region
    $region14: #{tpu_custom_call.1} parent=1 // pred_check
      _
    $region15: #{tpu_custom_call.1} parent=1 // pred_check_branch
      %53 = sbr.rel (0) target = $region17
    $region16: #{tpu_custom_call.1} parent=1 // pred_region
      %s55 = ssub.s32 128, 128
      %56 = vsyncadd [#allocation10], %s55
      %s58 = sshll.u32 [#allocation9], 4
      %s59 = int_to_ptr.vmem [resolvable:$true] %s58
      %61 = dma.hbm_to_vmem [thread:$0]  %s3, 128, %s59, [#allocation10]
    $region17: #{tpu_custom_call.1} parent=1 // pred_fallthru
      _
    // Predicated region
    $region18: #{tpu_custom_call.1} parent=1 // pred_check
      _
    $region19: #{tpu_custom_call.1} parent=1 // pred_check_branch
      %63 = sbr.rel (0) target = $region21
    $region20: #{tpu_custom_call.1} parent=1 // pred_region
      _
    $region21: #{tpu_custom_call.1} parent=1 // pred_fallthru
      _
    // Predicated region
    $region22: #{tpu_custom_call.1} parent=1 // pred_check
      _
    $region23: #{tpu_custom_call.1} parent=1 // pred_check_branch
      %65 = sbr.rel (0) target = $region25
    $region24: #{tpu_custom_call.1} parent=1 // pred_region
      %s67 = ssub.s32 512, 512
      %68 = vsyncadd [#allocation10], %s67
      %s69 = sshll.u32 [#allocation11], 4
      %s70 = int_to_ptr.vmem [resolvable:$true] %s69
      %75 = dma.hbm_to_vmem [thread:$0]  %s5, 512, %s70, [#allocation10], 128, 128, 8
    $region25: #{tpu_custom_call.1} parent=1 // pred_fallthru
      _
    // Predicated region
    $region26: #{tpu_custom_call.1} parent=1 // pred_check
      _
    $region27: #{tpu_custom_call.1} parent=1 // pred_check_branch
      %77 = sbr.rel (0) target = $region29
    $region28: #{tpu_custom_call.1} parent=1 // pred_region
      _
    $region29: #{tpu_custom_call.1} parent=1 // pred_fallthru
      _
    // Predicated region
    $region30: #{tpu_custom_call.1} parent=1 // pred_check
      _
    $region31: #{tpu_custom_call.1} parent=1 // pred_check_branch
      %79 = sbr.rel (0) target = $region33
    $region32: #{tpu_custom_call.1} parent=1 // pred_region
      _
    $region33: #{tpu_custom_call.1} parent=1 // pred_fallthru
      _
    // Predicated region
    $region34: #{tpu_custom_call.1} parent=1 // pred_check
      _
    $region35: #{tpu_custom_call.1} parent=1 // pred_check_branch
      %81 = sbr.rel (0) target = $region37
    $region36: #{tpu_custom_call.1} parent=1 // pred_region
      _
    $region37: #{tpu_custom_call.1} parent=1 // pred_fallthru
      _
    // Predicated region
    $region38: #{tpu_custom_call.1} parent=1 // pred_check
      _
    $region39: #{tpu_custom_call.1} parent=1 // pred_check_branch
      %83 = sbr.rel (0) target = $region41
    $region40: #{tpu_custom_call.1} parent=1 // pred_region
      %84 = dma.done [#allocation4], 128
    $region41: #{tpu_custom_call.1} parent=1 // pred_fallthru
      _
    // Predicated region
    $region42: #{tpu_custom_call.1} parent=1 // pred_check
      _
    $region43: #{tpu_custom_call.1} parent=1 // pred_check_branch
      %86 = sbr.rel (0) target = $region45
    $region44: #{tpu_custom_call.1} parent=1 // pred_region
      %87 = dma.done [#allocation7], 128
    $region45: #{tpu_custom_call.1} parent=1 // pred_fallthru
      _
    // Predicated region
    $region46: #{tpu_custom_call.1} parent=1 // pred_check
      _
    $region47: #{tpu_custom_call.1} parent=1 // pred_check_branch
      %89 = sbr.rel (0) target = $region49
    $region48: #{tpu_custom_call.1} parent=1 // pred_region
      %90 = dma.done [#allocation7], 256
    $region49: #{tpu_custom_call.1} parent=1 // pred_fallthru
      _
    // Predicated region
    $region50: #{tpu_custom_call.1} parent=1 // pred_check
      _
    $region51: #{tpu_custom_call.1} parent=1 // pred_check_branch
      %92 = sbr.rel (0) target = $region53
    $region52: #{tpu_custom_call.1} parent=1 // pred_region
      %93 = dma.done [#allocation10], 128
    $region53: #{tpu_custom_call.1} parent=1 // pred_fallthru
      _
    // Predicated region
    $region54: #{tpu_custom_call.1} parent=1 // pred_check
      _
    $region55: #{tpu_custom_call.1} parent=1 // pred_check_branch
      %95 = sbr.rel (0) target = $region57
    $region56: #{tpu_custom_call.1} parent=1 // pred_region
      %96 = dma.done [#allocation10], 512
    $region57: #{tpu_custom_call.1} parent=1 // pred_fallthru
      _
    %v97 = vld [vmem:[#allocation3] sm:$0xff]
    %v98 = vld [vmem:[#allocation8] sm:$0xff]
    %v99 = vld [vmem:[#allocation8 + $0x8] sm:$0xff]
    %v100 = vld [vmem:[#allocation6] sm:$0xff]
    %v101 = vld [vmem:[#allocation9] sm:$0xff]
    %vm102 = vcmask 64512
    %v104 = vsel %vm102, %v100, 0
    %106 = vmatprep.subr.mxu0 0.0
    %107 = vmatpush1.msra.mxu0 0.0
    %108 = vmatprep.subr.mxu0 0.0
    %109 = vmatpush1.msra.mxu0 0.0
    %110 = vmatprep.subr.mxu0 0.0
    %111 = vmatpush1.msra.mxu0 0.0
    %112 = vmatprep.subr.mxu0 0.0
    %113 = vmatpush1.msra.mxu0 0.0
    %114 = vmatprep.subr.mxu0 0.0
    %115 = vmatpush1.msra.mxu0 0.0
    %116 = vmatprep.subr.mxu0 0.0
    %117 = vmatpush1.msra.mxu0 0.0
    %118 = vmatprep.subr.mxu0 0.0
    %119 = vmatpush1.msra.mxu0 0.0
    %120 = vmatprep.subr.mxu0 0.0
    %121 = vmatpush1.msra.mxu0 0.0
    %122 = vmatprep.subr.mxu0 0.0
    %123 = vmatpush1.msra.mxu0 0.0
    %124 = vmatprep.subr.mxu0 0.0
    %125 = vmatpush1.msra.mxu0 0.0
    %126 = vmatprep.subr.mxu0 0.0
    %127 = vmatpush1.msra.mxu0 0.0
    %128 = vmatprep.subr.mxu0 0.0
    %129 = vmatpush1.msra.mxu0 0.0
    %130 = vmatprep.subr.mxu0 0.0
    %131 = vmatpush1.msra.mxu0 0.0
    %132 = vmatprep.subr.mxu0 0.0
    %133 = vmatpush1.msra.mxu0 0.0
    %134 = vmatprep.subr.mxu0 0.0
    %135 = vmatpush1.msra.mxu0 0.0
    %136 = vmatprep.subr.mxu0 0.0
    %137 = vmatpush1.msra.mxu0 %v101
    %138 = vmatprep.subr.mxu0 0.0
    %139 = vmatpush2.msra.mxu0 0.0
    %140 = vmatprep.subr.mxu0 0.0
    %141 = vmatpush2.msra.mxu0 0.0
    %142 = vmatprep.subr.mxu0 0.0
    %143 = vmatpush2.msra.mxu0 0.0
    %144 = vmatprep.subr.mxu0 0.0
    %145 = vmatpush2.msra.mxu0 0.0
    %146 = vmatprep.subr.mxu0 0.0
    %147 = vmatpush2.msra.mxu0 0.0
    %148 = vmatprep.subr.mxu0 0.0
    %149 = vmatpush2.msra.mxu0 0.0
    %150 = vmatprep.subr.mxu0 0.0
    %151 = vmatpush2.msra.mxu0 0.0
    %152 = vmatprep.subr.mxu0 0.0
    %153 = vmatpush2.msra.mxu0 0.0
    %154 = vmatprep.subr.mxu0 0.0
    %155 = vmatpush2.msra.mxu0 0.0
    %156 = vmatprep.subr.mxu0 0.0
    %157 = vmatpush2.msra.mxu0 0.0
    %158 = vmatprep.subr.mxu0 0.0
    %159 = vmatpush2.msra.mxu0 0.0
    %160 = vmatprep.subr.mxu0 0.0
    %161 = vmatpush2.msra.mxu0 0.0
    %162 = vmatprep.subr.mxu0 0.0
    %163 = vmatpush2.msra.mxu0 0.0
    %164 = vmatprep.subr.mxu0 0.0
    %165 = vmatpush2.msra.mxu0 0.0
    %166 = vmatprep.subr.mxu0 0.0
    %167 = vmatpush2.msra.mxu0 0.0
    %168 = vmatprep.subr.mxu0 0.0
    %169 = vmatpush2.msra.mxu0 0.0
    %170 = vmatprep.mubr.f32.mxu0 0.0
    %171 = vmatmul.mubr.f32.gmra.mxu0 %v104
    %v172 = vpop.f32.mrf.mxu0
    %v173 = vadd.f32 0.0, %v172
    %v174 = vpop.f32.mrf.mxu0
    %175 = vdwg.mxu0
    %vm176 = vcmask 130048
    %v178 = vsel %vm176, %v97, 0
    %180 = vmatprep.subr.mxu0 0.0
    %181 = vmatpush1.msra.mxu0 0.0
    %182 = vmatprep.subr.mxu0 0.0
    %183 = vmatpush1.msra.mxu0 0.0
    %184 = vmatprep.subr.mxu0 0.0
    %185 = vmatpush1.msra.mxu0 0.0
    %186 = vmatprep.subr.mxu0 0.0
    %187 = vmatpush1.msra.mxu0 0.0
    %188 = vmatprep.subr.mxu0 0.0
    %189 = vmatpush1.msra.mxu0 0.0
    %190 = vmatprep.subr.mxu0 0.0
    %191 = vmatpush1.msra.mxu0 0.0
    %192 = vmatprep.subr.mxu0 0.0
    %193 = vmatpush1.msra.mxu0 0.0
    %194 = vmatprep.subr.mxu0 0.0
    %195 = vmatpush1.msra.mxu0 0.0
    %196 = vmatprep.subr.mxu0 0.0
    %197 = vmatpush1.msra.mxu0 0.0
    %198 = vmatprep.subr.mxu0 0.0
    %199 = vmatpush1.msra.mxu0 0.0
    %200 = vmatprep.subr.mxu0 0.0
    %201 = vmatpush1.msra.mxu0 0.0
    %202 = vmatprep.subr.mxu0 0.0
    %203 = vmatpush1.msra.mxu0 0.0
    %204 = vmatprep.subr.mxu0 0.0
    %205 = vmatpush1.msra.mxu0 0.0
    %206 = vmatprep.subr.mxu0 0.0
    %207 = vmatpush1.msra.mxu0 0.0
    %208 = vmatprep.subr.mxu0 0.0
    %209 = vmatpush1.msra.mxu0 %v99
    %210 = vmatprep.subr.mxu0 0.0
    %211 = vmatpush1.msra.mxu0 %v98
    %212 = vmatprep.subr.mxu0 0.0
    %213 = vmatpush2.msra.mxu0 0.0
    %214 = vmatprep.subr.mxu0 0.0
    %215 = vmatpush2.msra.mxu0 0.0
    %216 = vmatprep.subr.mxu0 0.0
    %217 = vmatpush2.msra.mxu0 0.0
    %218 = vmatprep.subr.mxu0 0.0
    %219 = vmatpush2.msra.mxu0 0.0
    %220 = vmatprep.subr.mxu0 0.0
    %221 = vmatpush2.msra.mxu0 0.0
    %222 = vmatprep.subr.mxu0 0.0
    %223 = vmatpush2.msra.mxu0 0.0
    %224 = vmatprep.subr.mxu0 0.0
    %225 = vmatpush2.msra.mxu0 0.0
    %226 = vmatprep.subr.mxu0 0.0
    %227 = vmatpush2.msra.mxu0 0.0
    %228 = vmatprep.subr.mxu0 0.0
    %229 = vmatpush2.msra.mxu0 0.0
    %230 = vmatprep.subr.mxu0 0.0
    %231 = vmatpush2.msra.mxu0 0.0
    %232 = vmatprep.subr.mxu0 0.0
    %233 = vmatpush2.msra.mxu0 0.0
    %234 = vmatprep.subr.mxu0 0.0
    %235 = vmatpush2.msra.mxu0 0.0
    %236 = vmatprep.subr.mxu0 0.0
    %237 = vmatpush2.msra.mxu0 0.0
    %238 = vmatprep.subr.mxu0 0.0
    %239 = vmatpush2.msra.mxu0 0.0
    %240 = vmatprep.subr.mxu0 0.0
    %241 = vmatpush2.msra.mxu0 0.0
    %242 = vmatprep.subr.mxu0 0.0
    %243 = vmatpush2.msra.mxu0 0.0
    %244 = vmatprep.mubr.f32.mxu0 0.0
    %245 = vmatmul.mubr.f32.gmra.mxu0 %v178
    %v246 = vpop.f32.mrf.mxu0
    %v247 = vadd.f32 %v173, %v246
    %v248 = vpop.f32.mrf.mxu0
    %249 = vdwg.mxu0
    %v250 = vld [vmem:[%s4] sm:$0x1]
    %v252 = vlaneseq
    %v253 = vshrl.u32 %v252, 7
    %v254 = vsub.s32 0, %v253
    %v255 = vrot.slane %v250, %v254
    %v257 = vadd.f32 %v247, %v255
    %v258 = vmax.f32 %v257, 0.0
    %v259 = vld [vmem:[#allocation11] sm:$0xff]
    %v260 = vld [vmem:[#allocation11 + $0x8] sm:$0xff]
    %v261 = vld [vmem:[#allocation11 + $0x10] sm:$0xff]
    %v262 = vld [vmem:[#allocation11 + $0x18] sm:$0xff]
    %v263 = vld [vmem:[%s6] sm:$0x1]
    %v265 = vlaneseq
    %v266 = vshrl.u32 %v265, 7
    %v267 = vsub.s32 0, %v266
    %v268 = vrot.slane %v263, %v267
    %vm270 = vcmask 261120
    %v272 = vsel %vm270, %v258, 0
    %274 = vmatprep.subr.mxu0 0.0
    %275 = vmatpush1.msra.mxu0 0.0
    %276 = vmatprep.subr.mxu0 0.0
    %277 = vmatpush1.msra.mxu0 0.0
    %278 = vmatprep.subr.mxu0 0.0
    %279 = vmatpush1.msra.mxu0 0.0
    %280 = vmatprep.subr.mxu0 0.0
    %281 = vmatpush1.msra.mxu0 0.0
    %282 = vmatprep.subr.mxu0 0.0
    %283 = vmatpush1.msra.mxu0 0.0
    %284 = vmatprep.subr.mxu0 0.0
    %285 = vmatpush1.msra.mxu0 0.0
    %286 = vmatprep.subr.mxu0 0.0
    %287 = vmatpush1.msra.mxu0 0.0
    %288 = vmatprep.subr.mxu0 0.0
    %289 = vmatpush1.msra.mxu0 0.0
    %290 = vmatprep.subr.mxu0 0.0
    %291 = vmatpush1.msra.mxu0 0.0
    %292 = vmatprep.subr.mxu0 0.0
    %293 = vmatpush1.msra.mxu0 0.0
    %294 = vmatprep.subr.mxu0 0.0
    %295 = vmatpush1.msra.mxu0 0.0
    %296 = vmatprep.subr.mxu0 0.0
    %297 = vmatpush1.msra.mxu0 0.0
    %298 = vmatprep.subr.mxu0 0.0
    %299 = vmatpush1.msra.mxu0 %v262
    %300 = vmatprep.subr.mxu0 0.0
    %301 = vmatpush1.msra.mxu0 %v261
    %302 = vmatprep.subr.mxu0 0.0
    %303 = vmatpush1.msra.mxu0 %v260
    %304 = vmatprep.subr.mxu0 0.0
    %305 = vmatpush1.msra.mxu0 %v259
    %306 = vmatprep.subr.mxu0 0.0
    %307 = vmatpush2.msra.mxu0 0.0
    %308 = vmatprep.subr.mxu0 0.0
    %309 = vmatpush2.msra.mxu0 0.0
    %310 = vmatprep.subr.mxu0 0.0
    %311 = vmatpush2.msra.mxu0 0.0
    %312 = vmatprep.subr.mxu0 0.0
    %313 = vmatpush2.msra.mxu0 0.0
    %314 = vmatprep.subr.mxu0 0.0
    %315 = vmatpush2.msra.mxu0 0.0
    %316 = vmatprep.subr.mxu0 0.0
    %317 = vmatpush2.msra.mxu0 0.0
    %318 = vmatprep.subr.mxu0 0.0
    %319 = vmatpush2.msra.mxu0 0.0
    %320 = vmatprep.subr.mxu0 0.0
    %321 = vmatpush2.msra.mxu0 0.0
    %322 = vmatprep.subr.mxu0 0.0
    %323 = vmatpush2.msra.mxu0 0.0
    %324 = vmatprep.subr.mxu0 0.0
    %325 = vmatpush2.msra.mxu0 0.0
    %326 = vmatprep.subr.mxu0 0.0
    %327 = vmatpush2.msra.mxu0 0.0
    %328 = vmatprep.subr.mxu0 0.0
    %329 = vmatpush2.msra.mxu0 0.0
    %330 = vmatprep.subr.mxu0 0.0
    %331 = vmatpush2.msra.mxu0 0.0
    %332 = vmatprep.subr.mxu0 0.0
    %333 = vmatpush2.msra.mxu0 0.0
    %334 = vmatprep.subr.mxu0 0.0
    %335 = vmatpush2.msra.mxu0 0.0
    %336 = vmatprep.subr.mxu0 0.0
    %337 = vmatpush2.msra.mxu0 0.0
    %338 = vmatprep.mubr.f32.mxu0 0.0
    %339 = vmatmul.mubr.f32.gmra.mxu0 %v272
    %v340 = vpop.f32.mrf.mxu0
    %v341 = vadd.f32 %v268, %v340
    %v342 = vpop.f32.mrf.mxu0
    %343 = vdwg.mxu0
    %v344 = vmax.f32 %v341, 0.0
    %v345 = vld [vmem:[%s7] sm:$0x1]
    %v346 = vld [vmem:[#allocation2] sm:$0x1]
    %348 = vset.pattern.permute.xlu0 0
    %349 = vperm.xlu0 %348, %v346
    %v350 = vpop.permute.xlu0 %349
    %v352 = vlaneseq
    %v353 = vshrl.u32 %v352, 7
    %v354 = vsub.s32 0, %v353
    %v355 = vrot.slane %v350, %v354
    %v357 = vsel %vm270, %v345, 0
    %v360 = vsel %vm270, %v344, 0
    %362 = vmatprep.subr.mxu0 0.0
    %363 = vmatpush1.xpose.msra.mxu0 0.0
    %364 = vmatprep.subr.mxu0 0.0
    %365 = vmatpush1.xpose.msra.mxu0 0.0
    %366 = vmatprep.subr.mxu0 0.0
    %367 = vmatpush1.xpose.msra.mxu0 0.0
    %368 = vmatprep.subr.mxu0 0.0
    %369 = vmatpush1.xpose.msra.mxu0 0.0
    %370 = vmatprep.subr.mxu0 0.0
    %371 = vmatpush1.xpose.msra.mxu0 0.0
    %372 = vmatprep.subr.mxu0 0.0
    %373 = vmatpush1.xpose.msra.mxu0 0.0
    %374 = vmatprep.subr.mxu0 0.0
    %375 = vmatpush1.xpose.msra.mxu0 0.0
    %376 = vmatprep.subr.mxu0 0.0
    %377 = vmatpush1.xpose.msra.mxu0 0.0
    %378 = vmatprep.subr.mxu0 0.0
    %379 = vmatpush1.xpose.msra.mxu0 0.0
    %380 = vmatprep.subr.mxu0 0.0
    %381 = vmatpush1.xpose.msra.mxu0 0.0
    %382 = vmatprep.subr.mxu0 0.0
    %383 = vmatpush1.xpose.msra.mxu0 0.0
    %384 = vmatprep.subr.mxu0 0.0
    %385 = vmatpush1.xpose.msra.mxu0 0.0
    %386 = vmatprep.subr.mxu0 0.0
    %387 = vmatpush1.xpose.msra.mxu0 0.0
    %388 = vmatprep.subr.mxu0 0.0
    %389 = vmatpush1.xpose.msra.mxu0 0.0
    %390 = vmatprep.subr.mxu0 0.0
    %391 = vmatpush1.xpose.msra.mxu0 0.0
    %392 = vmatprep.subr.mxu0 0.0
    %393 = vmatpush1.xpose.msra.mxu0 %v360
    %394 = vmatprep.subr.mxu0 0.0
    %395 = vmatpush2.xpose.msra.mxu0 0.0
    %396 = vmatprep.subr.mxu0 0.0
    %397 = vmatpush2.xpose.msra.mxu0 0.0
    %398 = vmatprep.subr.mxu0 0.0
    %399 = vmatpush2.xpose.msra.mxu0 0.0
    %400 = vmatprep.subr.mxu0 0.0
    %401 = vmatpush2.xpose.msra.mxu0 0.0
    %402 = vmatprep.subr.mxu0 0.0
    %403 = vmatpush2.xpose.msra.mxu0 0.0
    %404 = vmatprep.subr.mxu0 0.0
    %405 = vmatpush2.xpose.msra.mxu0 0.0
    %406 = vmatprep.subr.mxu0 0.0
    %407 = vmatpush2.xpose.msra.mxu0 0.0
    %408 = vmatprep.subr.mxu0 0.0
    %409 = vmatpush2.xpose.msra.mxu0 0.0
    %410 = vmatprep.subr.mxu0 0.0
    %411 = vmatpush2.xpose.msra.mxu0 0.0
    %412 = vmatprep.subr.mxu0 0.0
    %413 = vmatpush2.xpose.msra.mxu0 0.0
    %414 = vmatprep.subr.mxu0 0.0
    %415 = vmatpush2.xpose.msra.mxu0 0.0
    %416 = vmatprep.subr.mxu0 0.0
    %417 = vmatpush2.xpose.msra.mxu0 0.0
    %418 = vmatprep.subr.mxu0 0.0
    %419 = vmatpush2.xpose.msra.mxu0 0.0
    %420 = vmatprep.subr.mxu0 0.0
    %421 = vmatpush2.xpose.msra.mxu0 0.0
    %422 = vmatprep.subr.mxu0 0.0
    %423 = vmatpush2.xpose.msra.mxu0 0.0
    %424 = vmatprep.subr.mxu0 0.0
    %425 = vmatpush2.xpose.msra.mxu0 0.0
    %426 = vmatprep.mubr.f32.mxu0 0.0
    %427 = vmatmul.mubr.f32.gmra.mxu0 %v357
    %v428 = vpop.f32.mrf.mxu0
    %v429 = vadd.f32 %v355, %v428
    %v430 = vpop.f32.mrf.mxu0
    %431 = vdwg.mxu0
    %vm432 = vcmask 57344
    %433 = vst.msk [vmem:[#allocation12] sm:$0x1] %vm432, %v429
    // Predicated region
    $region58: #{tpu_custom_call.1} parent=1 // pred_check
      _
    $region59: #{tpu_custom_call.1} parent=1 // pred_check_branch
      %435 = sbr.rel (0) target = $region61
    $region60: #{tpu_custom_call.1} parent=1 // pred_region
      %s437 = ssub.s32 16, 16
      %438 = vsyncadd [#allocation5], %s437
      %s440 = sshll.u32 [#allocation12], 4
      %s441 = int_to_ptr.vmem [resolvable:$true] %s440
      %443 = dma.vmem_to_hbm [thread:$0]  %s441, 16, %s9, [#allocation5]
    $region61: #{tpu_custom_call.1} parent=1 // pred_fallthru
      _
    // Predicated region
    $region62: #{tpu_custom_call.1} parent=1 // pred_check
      _
    $region63: #{tpu_custom_call.1} parent=1 // pred_check_branch
      %445 = sbr.rel (0) target = $region65
    $region64: #{tpu_custom_call.1} parent=1 // pred_region
      %446 = dma.done [#allocation5], 16
    $region65: #{tpu_custom_call.1} parent=1 // pred_fallthru
      _
    %447 = vsyncpa [#allocation4], 1
    %448 = vsyncpa [#allocation7], 1
    %449 = vsyncpa [#allocation10], 1
    %450 = vsyncpa [#allocation5], 1

</llo_original>
